<compile_context>
chip_gen: v6e
topology: v6e:2x2x1
jax: 0.10.0
libtpu: 0.0.40
codegen_flags: <defaults>
</compile_context>

<pallas_src>
import jax
import jax.numpy as jnp
import numpy as np
from jax import lax
from jax.experimental import pallas as pl
from jax.experimental.pallas import tpu as pltpu


# ----------------------------------------------------------------------------
# Kernel
# ----------------------------------------------------------------------------
def _make_kernel(H):
    """Fused bottleneck over one block of whole images.

    Layout: rows = image rows (block holds whole images), lanes = W * channels
    (pixel-major, channel-minor). All matmul weights are pre-folded host-side.
    """

    def kernel(x_ref, w1_ref, w2_ref, w3_ref,
               t1_ref, a1_ref, t2_ref, a2_ref, t3_ref, a3_ref, y_ref):
        x = x_ref[...]                                   # (R, W*Cin) f32
        R = x.shape[0]

        def prelu(v, a):
            return jnp.maximum(v, 0.0) + a * jnp.minimum(v, 0.0)

        # ---- block1x1_1: 1x1 conv (BN folded into block-diag bf16 weight) + PReLU
        h = jnp.dot(x.astype(jnp.bfloat16), w1_ref[...],
                    preferred_element_type=jnp.float32)
        h = prelu(h + t1_ref[...], a1_ref[...])          # (R, W*Cint) f32

        # ---- middle_block: 3x3 conv, padding=1 (bias+BN folded).
        # x-offsets and x zero-padding live inside the block-banded weight; the
        # y-offsets are two sublane rolls masked at image top/bottom rows.
        y_in_img = lax.broadcasted_iota(jnp.int32, (R, 1), 0) % H
        up = jnp.where(y_in_img >= 1, pltpu.roll(h, 1, 0), 0.0)          # h[r-1]
        dn = jnp.where(y_in_img <= H - 2, pltpu.roll(h, R - 1, 0), 0.0)  # h[r+1]
        taps = jnp.concatenate([up, h, dn], axis=1).astype(jnp.bfloat16)
        g = jnp.dot(taps, w2_ref[...], preferred_element_type=jnp.float32)
        g = prelu(g + t2_ref[...], a2_ref[...])          # (R, W*Cint) f32

        # ---- block1x1_2: 1x1 conv + PReLU
        o = jnp.dot(g.astype(jnp.bfloat16), w3_ref[...],
                    preferred_element_type=jnp.float32)
        o = prelu(o + t3_ref[...], a3_ref[...])          # (R, W*Cout) f32

        # ---- residual add + ReLU
        y_ref[...] = jnp.maximum(x + o, 0.0)

    return kernel


# ----------------------------------------------------------------------------
# Tiling choice (whole-image tiles; sublane-aligned; prefers >= 2 grid steps)
# ----------------------------------------------------------------------------
def _pick_images_per_block(N, H, bytes_per_image, budget=1 << 20):
    cands = [d for d in range(1, N + 1)
             if N % d == 0 and ((d * H) % 8 == 0 or d == N)]
    if not cands:
        return N
    fit = [d for d in cands if d * bytes_per_image <= budget] or [min(cands)]
    multi = [d for d in fit if N // d >= 2]   # enable pipelining / megacore
    return max(multi) if multi else max(fit)


# ----------------------------------------------------------------------------
# Wrapper
# ----------------------------------------------------------------------------
@jax.jit
def bottleneck_forward(x_nchw, fp):
    """x_nchw: (N, Cin, H, W) float32 — same NCHW interface as the PyTorch module.
    fp: folded/packed params from fold_params()."""
    N, Cin, H, W = x_nchw.shape
    Cout = fp["w3"].shape[1] // W
    assert Cin == Cout, "regular (non-downsampling) bottleneck needs Cin == Cout"
    assert fp["w1"].shape[0] == W * Cin

    rows_total = N * H
    # Layout glue: NCHW -> NHWC -> (N*H, W*Cin)  (lane-dense: pixel-major lanes)
    x2d = jnp.transpose(x_nchw, (0, 2, 3, 1)).reshape(rows_total, W * Cin)

    tb = _pick_images_per_block(N, H, H * W * max(Cin, Cout) * 4)
    rows = tb * H
    grid = (N // tb,)

    def const_spec(a):
        return pl.BlockSpec(a.shape, lambda i: (0, 0))

    y2d = pl.pallas_call(
        _make_kernel(H),
        out_shape=jax.ShapeDtypeStruct((rows_total, W * Cout), jnp.float32),
        grid=grid,
        in_specs=[pl.BlockSpec((rows, W * Cin), lambda i: (i, 0)),
                  const_spec(fp["w1"]), const_spec(fp["w2"]), const_spec(fp["w3"]),
                  const_spec(fp["t1"]), const_spec(fp["a1"]),
                  const_spec(fp["t2"]), const_spec(fp["a2"]),
                  const_spec(fp["t3"]), const_spec(fp["a3"])],
        out_specs=pl.BlockSpec((rows, W * Cout), lambda i: (i, 0)),
        compiler_params=pltpu.CompilerParams(
            dimension_semantics=("parallel",)),
    )(x2d, fp["w1"], fp["w2"], fp["w3"],
      fp["t1"], fp["a1"], fp["t2"], fp["a2"], fp["t3"], fp["a3"])

    return jnp.transpose(y2d.reshape(N, H, W, Cout), (0, 3, 1, 2))


# ----------------------------------------------------------------------------
# Host-side parameter folding into lane-packed block weights
# ----------------------------------------------------------------------------
def fold_params(p, W):
    """Fold BN scale/shift + conv bias into weights and build the lane-packed
    block-diagonal / block-banded matrices (done once, host-side, numpy)."""
    w1 = np.asarray(p["w1"], np.float32)               # (Cin, Cint)
    w2 = np.asarray(p["w2"], np.float32)               # (3, 3, Cint, Cint) HWIO
    b2 = np.asarray(p["b2"], np.float32).reshape(-1)
    w3 = np.asarray(p["w3"], np.float32)               # (Cint, Cout)
    s1 = np.asarray(p["s1"], np.float32); t1 = np.asarray(p["t1"], np.float32)
    s2 = np.asarray(p["s2"], np.float32); t2 = np.asarray(p["t2"], np.float32)
    s3 = np.asarray(p["s3"], np.float32); t3 = np.asarray(p["t3"], np.float32)
    a1 = np.asarray(p["a1"], np.float32)
    a2 = np.asarray(p["a2"], np.float32)
    a3 = np.asarray(p["a3"], np.float32)

    Cin, Cint = w1.shape
    Cout = w3.shape[1]
    WCi = W * Cint

    # BN scale folded into output columns of each conv
    w1f = w1 * s1[None, :]
    w3f = w3 * s3[None, :]
    w2f = w2 * s2[None, None, None, :]

    # 1x1 convs -> block-diagonal matmuls over the lane-packed layout
    eyeW = np.eye(W, dtype=np.float32)
    w1bd = np.kron(eyeW, w1f)                           # (W*Cin,  W*Cint)
    w3bd = np.kron(eyeW, w3f)                           # (W*Cint, W*Cout)

    # 3x3 conv -> block-banded matmul; rows stacked by ky (dy=-1,0,+1),
    # x-offsets and x zero-padding encoded by the band structure.
    w2band = np.zeros((3 * WCi, WCi), np.float32)
    for ky in range(3):
        for kx in range(3):
            dx = kx - 1
            blk = w2f[ky, kx]                           # (Cint_in, Cint_out)
            for xd in range(W):
                xs = xd + dx
                if 0 <= xs < W:
                    w2band[ky * WCi + xs * Cint: ky * WCi + (xs + 1) * Cint,
                           xd * Cint:(xd + 1) * Cint] = blk

    def tile_vec(v):
        v = np.asarray(v, np.float32).reshape(1, -1)
        return jnp.asarray(np.tile(v, (1, W)), jnp.float32)

    return dict(
        w1=jnp.asarray(w1bd, jnp.bfloat16),
        w2=jnp.asarray(w2band, jnp.bfloat16),
        w3=jnp.asarray(w3bd, jnp.bfloat16),
        t1=tile_vec(t1), a1=tile_vec(a1),
        t2=tile_vec(b2 * s2 + t2), a2=tile_vec(a2),     # conv bias folded with BN
        t3=tile_vec(t3), a3=tile_vec(a3),
    )


# ----------------------------------------------------------------------------
# Synthetic parameters (shapes from Bottleneck.__init__) and pure-JAX reference
# ----------------------------------------------------------------------------
def init_params(key, in_ch, out_ch):
    internal = out_ch // 4
    eps = 1e-3                                          # nn.BatchNorm2d(c, 0.001)
    ks = list(jax.random.split(key, 19))

    def bn_fold(c, k0, k1, k2, k3):
        gamma = 1.0 + 0.1 * jax.random.normal(k0, (c,), jnp.float32)
        beta = 0.1 * jax.random.normal(k1, (c,), jnp.float32)
        mean = 0.1 * jax.random.normal(k2, (c,), jnp.float32)
        var = jnp.abs(1.0 + 0.1 * jax.random.normal(k3, (c,), jnp.float32))
        scale = gamma / jnp.sqrt(var + eps)
        shift = beta - mean * scale
        return scale, shift

    # conv1x1_1: torch (internal, in_ch, 1, 1) -> (in_ch, internal)
    w1 = 0.2 * jax.random.normal(ks[0], (in_ch, internal), jnp.float32)
    s1, t1 = bn_fold(internal, ks[1], ks[2], ks[3], ks[4])
    a1 = 0.25 + 0.05 * jax.random.normal(ks[5], (internal,), jnp.float32)

    # middle conv: torch OIHW (internal, internal, 3, 3) -> HWIO (3,3,in,out)
    w2_oihw = 0.2 * jax.random.normal(ks[6], (internal, internal, 3, 3), jnp.float32)
    w2 = jnp.transpose(w2_oihw, (2, 3, 1, 0))
    b2 = 0.1 * jax.random.normal(ks[7], (internal,), jnp.float32)
    s2, t2 = bn_fold(internal, ks[8], ks[9], ks[10], ks[11])
    a2 = 0.25 + 0.05 * jax.random.normal(ks[12], (internal,), jnp.float32)

    # conv1x1_2: torch (out_ch, internal, 1, 1) -> (internal, out_ch)
    w3 = 0.2 * jax.random.normal(ks[13], (internal, out_ch), jnp.float32)
    s3, t3 = bn_fold(out_ch, ks[14], ks[15], ks[16], ks[17])
    a3 = 0.25 + 0.05 * jax.random.normal(ks[18], (out_ch,), jnp.float32)

    return dict(w1=w1, s1=s1, t1=t1, a1=a1,
                w2=w2, b2=b2, s2=s2, t2=t2, a2=a2,
                w3=w3, s3=s3, t3=t3, a3=a3)


def reference_forward(x_nchw, p):
    """Pure-JAX reference of the same math (for a sanity check)."""
    def prelu(v, a):
        a = a.reshape(1, -1, 1, 1)
        return jnp.maximum(v, 0.0) + a * jnp.minimum(v, 0.0)

    def bn(v, s, t):
        return v * s.reshape(1, -1, 1, 1) + t.reshape(1, -1, 1, 1)

    h = jnp.einsum("nchw,cd->ndhw", x_nchw, p["w1"])
    h = prelu(bn(h, p["s1"], p["t1"]), p["a1"])

    g = lax.conv_general_dilated(h, p["w2"], (1, 1), "SAME",
                                 dimension_numbers=("NCHW", "HWIO", "NCHW"))
    g = g + p["b2"].reshape(1, -1, 1, 1)
    g = prelu(bn(g, p["s2"], p["t2"]), p["a2"])

    o = jnp.einsum("ndhw,dk->nkhw", g, p["w3"])
    o = prelu(bn(o, p["s3"], p["t3"]), p["a3"])
    return jnp.maximum(x_nchw + o, 0.0)


if __name__ == "__main__":
    N, C, H, W = 2, 16, 16, 16            # input_channels == output_channels == 16
    key = jax.random.PRNGKey(0)
    kx, kp = jax.random.split(key)
    x = jax.random.normal(kx, (N, C, H, W), jnp.float32)

    raw = init_params(kp, in_ch=C, out_ch=C)
    folded = fold_params(raw, W)

    y = jax.block_until_ready(bottleneck_forward(x, folded))

    y_ref = reference_forward(x, raw)
    np.testing.assert_allclose(np.asarray(y), np.asarray(y_ref),
                               rtol=5e-2, atol=5e-2)
    print("KERNEL_OK")
</pallas_src>

<mosaic_0001>
module attributes {stable_mosaic.version = 11 : i64} {
  func.func @kernel(%arg0: i32, %arg1: memref<16x256xf32, #tpu.memory_space<vmem>>, %arg2: memref<256x64xbf16, #tpu.memory_space<vmem>>, %arg3: memref<192x64xbf16, #tpu.memory_space<vmem>>, %arg4: memref<64x256xbf16, #tpu.memory_space<vmem>>, %arg5: memref<1x64xf32, #tpu.memory_space<vmem>>, %arg6: memref<1x64xf32, #tpu.memory_space<vmem>>, %arg7: memref<1x64xf32, #tpu.memory_space<vmem>>, %arg8: memref<1x64xf32, #tpu.memory_space<vmem>>, %arg9: memref<1x256xf32, #tpu.memory_space<vmem>>, %arg10: memref<1x256xf32, #tpu.memory_space<vmem>>, %arg11: memref<16x256xf32, #tpu.memory_space<vmem>>) attributes {dimension_semantics = [#tpu.dimension_semantics<parallel>], iteration_bounds = array<i64: 2>, scalar_prefetch = 0 : i64, scratch_operands = 0 : i64, tpu.core_type = #tpu.core_type<tc>, window_params = [{transform_indices = @transform_0, window_bounds = array<i64: 16, 256>}, {pipeline_mode = #tpu.pipeline_mode<synchronous>, transform_indices = @transform_1, window_bounds = array<i64: 256, 64>}, {pipeline_mode = #tpu.pipeline_mode<synchronous>, transform_indices = @transform_2, window_bounds = array<i64: 192, 64>}, {pipeline_mode = #tpu.pipeline_mode<synchronous>, transform_indices = @transform_3, window_bounds = array<i64: 64, 256>}, {pipeline_mode = #tpu.pipeline_mode<synchronous>, transform_indices = @transform_4, window_bounds = array<i64: 1, 64>}, {pipeline_mode = #tpu.pipeline_mode<synchronous>, transform_indices = @transform_5, window_bounds = array<i64: 1, 64>}, {pipeline_mode = #tpu.pipeline_mode<synchronous>, transform_indices = @transform_6, window_bounds = array<i64: 1, 64>}, {pipeline_mode = #tpu.pipeline_mode<synchronous>, transform_indices = @transform_7, window_bounds = array<i64: 1, 64>}, {pipeline_mode = #tpu.pipeline_mode<synchronous>, transform_indices = @transform_8, window_bounds = array<i64: 1, 256>}, {pipeline_mode = #tpu.pipeline_mode<synchronous>, transform_indices = @transform_9, window_bounds = array<i64: 1, 256>}, {transform_indices = @transform_10, window_bounds = array<i64: 16, 256>}]} {
    %c0 = arith.constant 0 : index
    %c0_0 = arith.constant 0 : index
    %0 = vector.load %arg1[%c0, %c0_0] : memref<16x256xf32, #tpu.memory_space<vmem>>, vector<16x256xf32>
    %1 = arith.truncf %0 : vector<16x256xf32> to vector<16x256xbf16>
    %c0_1 = arith.constant 0 : index
    %c0_2 = arith.constant 0 : index
    %2 = vector.load %arg2[%c0_1, %c0_2] : memref<256x64xbf16, #tpu.memory_space<vmem>>, vector<256x64xbf16>
    %cst = arith.constant dense<0.000000e+00> : vector<16x64xf32>
    %3 = tpu.matmul %1, %2, %cst {dimension_numbers = #tpu.dot_dimension_numbers<[1], [0], [0], [1], [0, 0, 1, 1], [], []>} : vector<16x256xbf16>, vector<256x64xbf16>, vector<16x64xf32> -> vector<16x64xf32>
    %c0_3 = arith.constant 0 : index
    %c0_4 = arith.constant 0 : index
    %4 = vector.load %arg5[%c0_3, %c0_4] : memref<1x64xf32, #tpu.memory_space<vmem>>, vector<1x64xf32>
    %5 = vector.broadcast %4 : vector<1x64xf32> to vector<16x64xf32>
    %6 = arith.addf %3, %5 : vector<16x64xf32>
    %c0_5 = arith.constant 0 : index
    %c0_6 = arith.constant 0 : index
    %7 = vector.load %arg6[%c0_5, %c0_6] : memref<1x64xf32, #tpu.memory_space<vmem>>, vector<1x64xf32>
    %cst_7 = arith.constant 0.000000e+00 : f32
    %8 = vector.broadcast %cst_7 : f32 to vector<16x64xf32>
    %9 = arith.maximumf %6, %8 : vector<16x64xf32>
    %cst_8 = arith.constant 0.000000e+00 : f32
    %10 = vector.broadcast %cst_8 : f32 to vector<16x64xf32>
    %11 = arith.minimumf %6, %10 : vector<16x64xf32>
    %12 = vector.broadcast %7 : vector<1x64xf32> to vector<16x64xf32>
    %13 = arith.mulf %12, %11 : vector<16x64xf32>
    %14 = arith.addf %9, %13 : vector<16x64xf32>
    %15 = tpu.iota {dimensions = array<i32: 0>} : vector<16x1xi32>
    %c16_i32 = arith.constant 16 : i32
    %c0_i32 = arith.constant 0 : i32
    %16 = arith.cmpi eq, %c16_i32, %c0_i32 : i32
    %c1_i32 = arith.constant 1 : i32
    %17 = arith.select %16, %c1_i32, %c16_i32 : i32
    %18 = vector.broadcast %17 : i32 to vector<16x1xi32>
    %19 = arith.remsi %15, %18 : vector<16x1xi32>
    %c0_i32_9 = arith.constant 0 : i32
    %20 = vector.broadcast %c0_i32_9 : i32 to vector<16x1xi32>
    %21 = arith.cmpi ne, %19, %20 : vector<16x1xi32>
    %c0_i32_10 = arith.constant 0 : i32
    %22 = vector.broadcast %c0_i32_10 : i32 to vector<16x1xi32>
    %23 = arith.cmpi slt, %19, %22 : vector<16x1xi32>
    %c0_i32_11 = arith.constant 0 : i32
    %24 = arith.cmpi slt, %17, %c0_i32_11 : i32
    %25 = vector.broadcast %24 : i1 to vector<16x1xi1>
    %26 = vector.broadcast %25 : vector<16x1xi1> to vector<16x1xi1>
    %27 = arith.xori %23, %26 : vector<16x1xi1>
    %28 = arith.andi %27, %21 : vector<16x1xi1>
    %29 = vector.broadcast %17 : i32 to vector<16x1xi32>
    %30 = arith.addi %19, %29 : vector<16x1xi32>
    %31 = arith.select %28, %30, %19 : vector<16x1xi1>, vector<16x1xi32>
    %c1_i32_12 = arith.constant 1 : i32
    %32 = vector.broadcast %c1_i32_12 : i32 to vector<16x1xi32>
    %33 = arith.cmpi sge, %31, %32 : vector<16x1xi32>
    %c1_i32_13 = arith.constant 1 : i32
    %34 = tpu.dynamic_rotate %14 by %c1_i32_13 dim 0 : vector<16x64xf32>, i32 -> vector<16x64xf32>
    %cst_14 = arith.constant 0.000000e+00 : f32
    %35 = vector.shape_cast %33 : vector<16x1xi1> to vector<16x1xi1>
    %36 = vector.broadcast %35 : vector<16x1xi1> to vector<16x64xi1>
    %37 = vector.broadcast %cst_14 : f32 to vector<16x64xf32>
    %38 = arith.select %36, %34, %37 : vector<16x64xi1>, vector<16x64xf32>
    %c14_i32 = arith.constant 14 : i32
    %39 = vector.broadcast %c14_i32 : i32 to vector<16x1xi32>
    %40 = arith.cmpi sle, %31, %39 : vector<16x1xi32>
    %c15_i32 = arith.constant 15 : i32
    %41 = tpu.dynamic_rotate %14 by %c15_i32 dim 0 : vector<16x64xf32>, i32 -> vector<16x64xf32>
    %cst_15 = arith.constant 0.000000e+00 : f32
    %42 = vector.shape_cast %40 : vector<16x1xi1> to vector<16x1xi1>
    %43 = vector.broadcast %42 : vector<16x1xi1> to vector<16x64xi1>
    %44 = vector.broadcast %cst_15 : f32 to vector<16x64xf32>
    %45 = arith.select %43, %41, %44 : vector<16x64xi1>, vector<16x64xf32>
    %46 = tpu.concatenate %38, %14, %45 in 1 : vector<16x64xf32>, vector<16x64xf32>, vector<16x64xf32> -> vector<16x192xf32>
    %47 = arith.truncf %46 : vector<16x192xf32> to vector<16x192xbf16>
    %c0_16 = arith.constant 0 : index
    %c0_17 = arith.constant 0 : index
    %48 = vector.load %arg3[%c0_16, %c0_17] : memref<192x64xbf16, #tpu.memory_space<vmem>>, vector<192x64xbf16>
    %cst_18 = arith.constant dense<0.000000e+00> : vector<16x64xf32>
    %49 = tpu.matmul %47, %48, %cst_18 {dimension_numbers = #tpu.dot_dimension_numbers<[1], [0], [0], [1], [0, 0, 1, 1], [], []>} : vector<16x192xbf16>, vector<192x64xbf16>, vector<16x64xf32> -> vector<16x64xf32>
    %c0_19 = arith.constant 0 : index
    %c0_20 = arith.constant 0 : index
    %50 = vector.load %arg7[%c0_19, %c0_20] : memref<1x64xf32, #tpu.memory_space<vmem>>, vector<1x64xf32>
    %51 = vector.broadcast %50 : vector<1x64xf32> to vector<16x64xf32>
    %52 = arith.addf %49, %51 : vector<16x64xf32>
    %c0_21 = arith.constant 0 : index
    %c0_22 = arith.constant 0 : index
    %53 = vector.load %arg8[%c0_21, %c0_22] : memref<1x64xf32, #tpu.memory_space<vmem>>, vector<1x64xf32>
    %cst_23 = arith.constant 0.000000e+00 : f32
    %54 = vector.broadcast %cst_23 : f32 to vector<16x64xf32>
    %55 = arith.maximumf %52, %54 : vector<16x64xf32>
    %cst_24 = arith.constant 0.000000e+00 : f32
    %56 = vector.broadcast %cst_24 : f32 to vector<16x64xf32>
    %57 = arith.minimumf %52, %56 : vector<16x64xf32>
    %58 = vector.broadcast %53 : vector<1x64xf32> to vector<16x64xf32>
    %59 = arith.mulf %58, %57 : vector<16x64xf32>
    %60 = arith.addf %55, %59 : vector<16x64xf32>
    %61 = arith.truncf %60 : vector<16x64xf32> to vector<16x64xbf16>
    %c0_25 = arith.constant 0 : index
    %c0_26 = arith.constant 0 : index
    %62 = vector.load %arg4[%c0_25, %c0_26] : memref<64x256xbf16, #tpu.memory_space<vmem>>, vector<64x256xbf16>
    %cst_27 = arith.constant dense<0.000000e+00> : vector<16x256xf32>
    %63 = tpu.matmul %61, %62, %cst_27 {dimension_numbers = #tpu.dot_dimension_numbers<[1], [0], [0], [1], [0, 0, 1, 1], [], []>} : vector<16x64xbf16>, vector<64x256xbf16>, vector<16x256xf32> -> vector<16x256xf32>
    %c0_28 = arith.constant 0 : index
    %c0_29 = arith.constant 0 : index
    %64 = vector.load %arg9[%c0_28, %c0_29] : memref<1x256xf32, #tpu.memory_space<vmem>>, vector<1x256xf32>
    %65 = vector.broadcast %64 : vector<1x256xf32> to vector<16x256xf32>
    %66 = arith.addf %63, %65 : vector<16x256xf32>
    %c0_30 = arith.constant 0 : index
    %c0_31 = arith.constant 0 : index
    %67 = vector.load %arg10[%c0_30, %c0_31] : memref<1x256xf32, #tpu.memory_space<vmem>>, vector<1x256xf32>
    %cst_32 = arith.constant 0.000000e+00 : f32
    %68 = vector.broadcast %cst_32 : f32 to vector<16x256xf32>
    %69 = arith.maximumf %66, %68 : vector<16x256xf32>
    %cst_33 = arith.constant 0.000000e+00 : f32
    %70 = vector.broadcast %cst_33 : f32 to vector<16x256xf32>
    %71 = arith.minimumf %66, %70 : vector<16x256xf32>
    %72 = vector.broadcast %67 : vector<1x256xf32> to vector<16x256xf32>
    %73 = arith.mulf %72, %71 : vector<16x256xf32>
    %74 = arith.addf %69, %73 : vector<16x256xf32>
    %75 = arith.addf %0, %74 : vector<16x256xf32>
    %cst_34 = arith.constant 0.000000e+00 : f32
    %76 = vector.broadcast %cst_34 : f32 to vector<16x256xf32>
    %77 = arith.maximumf %75, %76 : vector<16x256xf32>
    %c0_35 = arith.constant 0 : index
    %c0_36 = arith.constant 0 : index
    %78 = vector.load %arg11[%c0_35, %c0_36] : memref<16x256xf32, #tpu.memory_space<vmem>>, vector<16x256xf32>
    tpu.vector_store %arg11[%c0_35, %c0_36], %77 {strides = array<i32>} : memref<16x256xf32, #tpu.memory_space<vmem>>, vector<16x256xf32>,
    return
  }
  func.func @transform_0(%arg0: i32) -> (i32, i32) {
    %c0_i32 = arith.constant 0 : i32
    %c0_i32_0 = arith.constant 0 : i32
    return %arg0, %c0_i32 : i32, i32
  }
  func.func @transform_1(%arg0: i32) -> (i32, i32) {
    %c0_i32 = arith.constant 0 : i32
    %c0_i32_0 = arith.constant 0 : i32
    %c0_i32_1 = arith.constant 0 : i32
    return %c0_i32, %c0_i32_0 : i32, i32
  }
  func.func @transform_2(%arg0: i32) -> (i32, i32) {
    %c0_i32 = arith.constant 0 : i32
    %c0_i32_0 = arith.constant 0 : i32
    %c0_i32_1 = arith.constant 0 : i32
    return %c0_i32, %c0_i32_0 : i32, i32
  }
  func.func @transform_3(%arg0: i32) -> (i32, i32) {
    %c0_i32 = arith.constant 0 : i32
    %c0_i32_0 = arith.constant 0 : i32
    %c0_i32_1 = arith.constant 0 : i32
    return %c0_i32, %c0_i32_0 : i32, i32
  }
  func.func @transform_4(%arg0: i32) -> (i32, i32) {
    %c0_i32 = arith.constant 0 : i32
    %c0_i32_0 = arith.constant 0 : i32
    %c0_i32_1 = arith.constant 0 : i32
    return %c0_i32, %c0_i32_0 : i32, i32
  }
  func.func @transform_5(%arg0: i32) -> (i32, i32) {
    %c0_i32 = arith.constant 0 : i32
    %c0_i32_0 = arith.constant 0 : i32
    %c0_i32_1 = arith.constant 0 : i32
    return %c0_i32, %c0_i32_0 : i32, i32
  }
  func.func @transform_6(%arg0: i32) -> (i32, i32) {
    %c0_i32 = arith.constant 0 : i32
    %c0_i32_0 = arith.constant 0 : i32
    %c0_i32_1 = arith.constant 0 : i32
    return %c0_i32, %c0_i32_0 : i32, i32
  }
  func.func @transform_7(%arg0: i32) -> (i32, i32) {
    %c0_i32 = arith.constant 0 : i32
    %c0_i32_0 = arith.constant 0 : i32
    %c0_i32_1 = arith.constant 0 : i32
    return %c0_i32, %c0_i32_0 : i32, i32
  }
  func.func @transform_8(%arg0: i32) -> (i32, i32) {
    %c0_i32 = arith.constant 0 : i32
    %c0_i32_0 = arith.constant 0 : i32
    %c0_i32_1 = arith.constant 0 : i32
    return %c0_i32, %c0_i32_0 : i32, i32
  }
  func.func @transform_9(%arg0: i32) -> (i32, i32) {
    %c0_i32 = arith.constant 0 : i32
    %c0_i32_0 = arith.constant 0 : i32
    %c0_i32_1 = arith.constant 0 : i32
    return %c0_i32, %c0_i32_0 : i32, i32
  }
  func.func @transform_10(%arg0: i32) -> (i32, i32) {
    %c0_i32 = arith.constant 0 : i32
    %c0_i32_0 = arith.constant 0 : i32
    return %arg0, %c0_i32 : i32, i32
  }
}

</mosaic_0001>

<llo_original>
// kernel: bottleneck_forward.1
$region0: #{bottleneck_forward.1}
  #allocation0 [shape = 'u32[]', space=smem, size = 0x4, offset = 0x4, fixed_abs, tag = 'smem constant byte address 0x4 - core index']
  #allocation1 [shape = 'u32[144,128]{1,0:T(1,128)}', space=vmem, size = 0x12000, scoped, tag = 'internal scratch']
  %s0 = inlined_call_operand.vmem [shape: f32[32,256], index: 0, kind: input, shape index: {}]
  %s1 = inlined_call_operand.vmem [shape: bf16[256,64], index: 1, kind: input, shape index: {}]
  %s2 = inlined_call_operand.vmem [shape: bf16[192,64], index: 2, kind: input, shape index: {}]
  %s3 = inlined_call_operand.vmem [shape: bf16[64,256], index: 3, kind: input, shape index: {}]
  %s4 = inlined_call_operand.vmem [shape: f32[1,64], index: 4, kind: input, shape index: {}]
  %s5 = inlined_call_operand.vmem [shape: f32[1,64], index: 5, kind: input, shape index: {}]
  %s6 = inlined_call_operand.vmem [shape: f32[1,64], index: 6, kind: input, shape index: {}]
  %s7 = inlined_call_operand.vmem [shape: f32[1,64], index: 7, kind: input, shape index: {}]
  %s8 = inlined_call_operand.vmem [shape: f32[1,256], index: 8, kind: input, shape index: {}]
  %s9 = inlined_call_operand.vmem [shape: f32[1,256], index: 9, kind: input, shape index: {}]
  %s10 = inlined_call_operand.vmem [shape: f32[32,256], index: 10, kind: output, shape index: {}]
  %s11 = sld [smem:[#allocation0]]
  $region73: #{bottleneck_forward.1} parent=0
    _
  %s13 = ssub.s32 1, %s11
  %s14 = scalar_select 0, %s13, %s11
  loop: start=0, step=1, limit=4
  $region2: #{bottleneck_forward.1} parent=0 // loop_pre_header
    _
  $region3: #{bottleneck_forward.1} parent=0 // loop_header
    %s16 = sphi 0, %s20
    %p17 = scmp.ge.s32.totalorder %s16, 4
    %s26 = sphi 0, %s28
    %s29 = sphi 0, %s26
    %s30 = sphi 0, %s29
    %s46 = sphi 0, %s30
    %s50 = sphi 0, %s50
    %s52 = sphi 0, %s50
    %s53 = sphi 0, %s52
    %s67 = sphi 0, %s53
    %s71 = sphi 0, %s71
    %s73 = sphi 0, %s71
    %s74 = sphi 0, %s73
    %s88 = sphi 0, %s74
    %s92 = sphi 0, %s92
    %s94 = sphi 0, %s92
    %s95 = sphi 0, %s94
    %s109 = sphi 0, %s95
    %s113 = sphi 0, %s113
    %s115 = sphi 0, %s113
    %s116 = sphi 0, %s115
    %s130 = sphi 0, %s116
    %s134 = sphi 0, %s134
    %s136 = sphi 0, %s134
    %s137 = sphi 0, %s136
    %s151 = sphi 0, %s137
    %s155 = sphi 0, %s155
    %s157 = sphi 0, %s155
    %s158 = sphi 0, %s157
    %s172 = sphi 0, %s158
    %s176 = sphi 0, %s176
    %s178 = sphi 0, %s176
    %s179 = sphi 0, %s178
    %s193 = sphi 0, %s179
    %s197 = sphi 0, %s197
    %s199 = sphi 0, %s197
    %s200 = sphi 0, %s199
    %s214 = sphi 0, %s200
    %s218 = sphi 0, %s218
    %s220 = sphi 0, %s218
    %s221 = sphi 0, %s220
    %s235 = sphi 0, %s221
    %s241 = sphi 0, %s243
    %s244 = sphi 0, %s241
    %s245 = sphi 0, %s244
    %s261 = sphi 0, %s245
  $region4: #{bottleneck_forward.1} parent=0 // loop_header_branch
    %19 = sbr.rel (%p17) target = $region8
  $region5: #{bottleneck_forward.1} parent=0 // loop_body
    %s21 = ssub.s32 %s16, 1
    %s22 = ssub.s32 %s16, 2
    %s23 = sadd.s32 %s16, 1
    %s24 = ssub.s32 %s16, %s23
    %p25 = scmp.eq.s32.totalorder %s24, 0
    %s27 = sadd.s32 %s26, 1
    %s28 = scalar_select %p25, %s26, %s27
    %p31 = pneg %p25
    %p32 = scmp.eq.s32.totalorder %s16, 1
    %p33 = por %p31, %p32
    %p34 = scmp.ne.s32.totalorder %s26, %s29
    %p35 = scmp.eq.s32.totalorder %s16, 0
    %p36 = por %p34, %p35
    %p37 = scmp.ne.s32.totalorder %s26, %s29
    %p38 = scmp.eq.s32.totalorder %s21, 1
    %p39 = por %p37, %p38
    %p40 = scmp.ne.s32.totalorder %s29, %s30
    %p41 = scmp.eq.s32.totalorder %s21, 0
    %p42 = por %p40, %p41
    %p43 = scmp.ne.s32.totalorder %s29, %s30
    %p44 = scmp.eq.s32.totalorder %s22, 1
    %p45 = por %p43, %p44
    %p47 = scmp.ne.s32.totalorder %s30, %s46
    %p48 = scmp.eq.s32.totalorder %s22, 0
    %p49 = por %p47, %p48
    %s51 = sadd.s32 %s50, 1
    %p54 = scmp.eq.s32.totalorder %s16, 1
    %p55 = scmp.ne.s32.totalorder %s50, %s52
    %p56 = scmp.eq.s32.totalorder %s16, 0
    %p57 = por %p55, %p56
    %p58 = scmp.ne.s32.totalorder %s50, %s52
    %p59 = scmp.eq.s32.totalorder %s21, 1
    %p60 = por %p58, %p59
    %p61 = scmp.ne.s32.totalorder %s52, %s53
    %p62 = scmp.eq.s32.totalorder %s21, 0
    %p63 = por %p61, %p62
    %p64 = scmp.ne.s32.totalorder %s52, %s53
    %p65 = scmp.eq.s32.totalorder %s22, 1
    %p66 = por %p64, %p65
    %p68 = scmp.ne.s32.totalorder %s53, %s67
    %p69 = scmp.eq.s32.totalorder %s22, 0
    %p70 = por %p68, %p69
    %s72 = sadd.s32 %s71, 1
    %p75 = scmp.eq.s32.totalorder %s16, 1
    %p76 = scmp.ne.s32.totalorder %s71, %s73
    %p77 = scmp.eq.s32.totalorder %s16, 0
    %p78 = por %p76, %p77
    %p79 = scmp.ne.s32.totalorder %s71, %s73
    %p80 = scmp.eq.s32.totalorder %s21, 1
    %p81 = por %p79, %p80
    %p82 = scmp.ne.s32.totalorder %s73, %s74
    %p83 = scmp.eq.s32.totalorder %s21, 0
    %p84 = por %p82, %p83
    %p85 = scmp.ne.s32.totalorder %s73, %s74
    %p86 = scmp.eq.s32.totalorder %s22, 1
    %p87 = por %p85, %p86
    %p89 = scmp.ne.s32.totalorder %s74, %s88
    %p90 = scmp.eq.s32.totalorder %s22, 0
    %p91 = por %p89, %p90
    %s93 = sadd.s32 %s92, 1
    %p96 = scmp.eq.s32.totalorder %s16, 1
    %p97 = scmp.ne.s32.totalorder %s92, %s94
    %p98 = scmp.eq.s32.totalorder %s16, 0
    %p99 = por %p97, %p98
    %p100 = scmp.ne.s32.totalorder %s92, %s94
    %p101 = scmp.eq.s32.totalorder %s21, 1
    %p102 = por %p100, %p101
    %p103 = scmp.ne.s32.totalorder %s94, %s95
    %p104 = scmp.eq.s32.totalorder %s21, 0
    %p105 = por %p103, %p104
    %p106 = scmp.ne.s32.totalorder %s94, %s95
    %p107 = scmp.eq.s32.totalorder %s22, 1
    %p108 = por %p106, %p107
    %p110 = scmp.ne.s32.totalorder %s95, %s109
    %p111 = scmp.eq.s32.totalorder %s22, 0
    %p112 = por %p110, %p111
    %s114 = sadd.s32 %s113, 1
    %p117 = scmp.eq.s32.totalorder %s16, 1
    %p118 = scmp.ne.s32.totalorder %s113, %s115
    %p119 = scmp.eq.s32.totalorder %s16, 0
    %p120 = por %p118, %p119
    %p121 = scmp.ne.s32.totalorder %s113, %s115
    %p122 = scmp.eq.s32.totalorder %s21, 1
    %p123 = por %p121, %p122
    %p124 = scmp.ne.s32.totalorder %s115, %s116
    %p125 = scmp.eq.s32.totalorder %s21, 0
    %p126 = por %p124, %p125
    %p127 = scmp.ne.s32.totalorder %s115, %s116
    %p128 = scmp.eq.s32.totalorder %s22, 1
    %p129 = por %p127, %p128
    %p131 = scmp.ne.s32.totalorder %s116, %s130
    %p132 = scmp.eq.s32.totalorder %s22, 0
    %p133 = por %p131, %p132
    %s135 = sadd.s32 %s134, 1
    %p138 = scmp.eq.s32.totalorder %s16, 1
    %p139 = scmp.ne.s32.totalorder %s134, %s136
    %p140 = scmp.eq.s32.totalorder %s16, 0
    %p141 = por %p139, %p140
    %p142 = scmp.ne.s32.totalorder %s134, %s136
    %p143 = scmp.eq.s32.totalorder %s21, 1
    %p144 = por %p142, %p143
    %p145 = scmp.ne.s32.totalorder %s136, %s137
    %p146 = scmp.eq.s32.totalorder %s21, 0
    %p147 = por %p145, %p146
    %p148 = scmp.ne.s32.totalorder %s136, %s137
    %p149 = scmp.eq.s32.totalorder %s22, 1
    %p150 = por %p148, %p149
    %p152 = scmp.ne.s32.totalorder %s137, %s151
    %p153 = scmp.eq.s32.totalorder %s22, 0
    %p154 = por %p152, %p153
    %s156 = sadd.s32 %s155, 1
    %p159 = scmp.eq.s32.totalorder %s16, 1
    %p160 = scmp.ne.s32.totalorder %s155, %s157
    %p161 = scmp.eq.s32.totalorder %s16, 0
    %p162 = por %p160, %p161
    %p163 = scmp.ne.s32.totalorder %s155, %s157
    %p164 = scmp.eq.s32.totalorder %s21, 1
    %p165 = por %p163, %p164
    %p166 = scmp.ne.s32.totalorder %s157, %s158
    %p167 = scmp.eq.s32.totalorder %s21, 0
    %p168 = por %p166, %p167
    %p169 = scmp.ne.s32.totalorder %s157, %s158
    %p170 = scmp.eq.s32.totalorder %s22, 1
    %p171 = por %p169, %p170
    %p173 = scmp.ne.s32.totalorder %s158, %s172
    %p174 = scmp.eq.s32.totalorder %s22, 0
    %p175 = por %p173, %p174
    %s177 = sadd.s32 %s176, 1
    %p180 = scmp.eq.s32.totalorder %s16, 1
    %p181 = scmp.ne.s32.totalorder %s176, %s178
    %p182 = scmp.eq.s32.totalorder %s16, 0
    %p183 = por %p181, %p182
    %p184 = scmp.ne.s32.totalorder %s176, %s178
    %p185 = scmp.eq.s32.totalorder %s21, 1
    %p186 = por %p184, %p185
    %p187 = scmp.ne.s32.totalorder %s178, %s179
    %p188 = scmp.eq.s32.totalorder %s21, 0
    %p189 = por %p187, %p188
    %p190 = scmp.ne.s32.totalorder %s178, %s179
    %p191 = scmp.eq.s32.totalorder %s22, 1
    %p192 = por %p190, %p191
    %p194 = scmp.ne.s32.totalorder %s179, %s193
    %p195 = scmp.eq.s32.totalorder %s22, 0
    %p196 = por %p194, %p195
    %s198 = sadd.s32 %s197, 1
    %p201 = scmp.eq.s32.totalorder %s16, 1
    %p202 = scmp.ne.s32.totalorder %s197, %s199
    %p203 = scmp.eq.s32.totalorder %s16, 0
    %p204 = por %p202, %p203
    %p205 = scmp.ne.s32.totalorder %s197, %s199
    %p206 = scmp.eq.s32.totalorder %s21, 1
    %p207 = por %p205, %p206
    %p208 = scmp.ne.s32.totalorder %s199, %s200
    %p209 = scmp.eq.s32.totalorder %s21, 0
    %p210 = por %p208, %p209
    %p211 = scmp.ne.s32.totalorder %s199, %s200
    %p212 = scmp.eq.s32.totalorder %s22, 1
    %p213 = por %p211, %p212
    %p215 = scmp.ne.s32.totalorder %s200, %s214
    %p216 = scmp.eq.s32.totalorder %s22, 0
    %p217 = por %p215, %p216
    %s219 = sadd.s32 %s218, 1
    %p222 = scmp.eq.s32.totalorder %s16, 1
    %p223 = scmp.ne.s32.totalorder %s218, %s220
    %p224 = scmp.eq.s32.totalorder %s16, 0
    %p225 = por %p223, %p224
    %p226 = scmp.ne.s32.totalorder %s218, %s220
    %p227 = scmp.eq.s32.totalorder %s21, 1
    %p228 = por %p226, %p227
    %p229 = scmp.ne.s32.totalorder %s220, %s221
    %p230 = scmp.eq.s32.totalorder %s21, 0
    %p231 = por %p229, %p230
    %p232 = scmp.ne.s32.totalorder %s220, %s221
    %p233 = scmp.eq.s32.totalorder %s22, 1
    %p234 = por %p232, %p233
    %p236 = scmp.ne.s32.totalorder %s221, %s235
    %p237 = scmp.eq.s32.totalorder %s22, 0
    %p238 = por %p236, %p237
    %s239 = ssub.s32 %s16, %s23
    %p240 = scmp.eq.s32.totalorder %s239, 0
    %s242 = sadd.s32 %s241, 1
    %s243 = scalar_select %p240, %s241, %s242
    %p246 = pneg %p240
    %p247 = scmp.eq.s32.totalorder %s16, 1
    %p248 = por %p246, %p247
    %p249 = scmp.ne.s32.totalorder %s241, %s244
    %p250 = scmp.eq.s32.totalorder %s16, 0
    %p251 = por %p249, %p250
    %p252 = scmp.ne.s32.totalorder %s241, %s244
    %p253 = scmp.eq.s32.totalorder %s21, 1
    %p254 = por %p252, %p253
    %p255 = scmp.ne.s32.totalorder %s244, %s245
    %p256 = scmp.eq.s32.totalorder %s21, 0
    %p257 = por %p255, %p256
    %p258 = scmp.ne.s32.totalorder %s244, %s245
    %p259 = scmp.eq.s32.totalorder %s22, 1
    %p260 = por %p258, %p259
    %p262 = scmp.ne.s32.totalorder %s245, %s261
    %p263 = scmp.eq.s32.totalorder %s22, 0
    %p264 = por %p262, %p263
    %p265 = scmp.le.s32.totalorder 1, %s16
    %p266 = scmp.lt.s32.totalorder %s16, 3
    %p267 = pnand %p265, %p266
    %p268 = pneg %p267
    // Predicated region
    $region9: #{bottleneck_forward.1} parent=5 // pred_check
      _
    $region10: #{bottleneck_forward.1} parent=5 // pred_check_branch
      %270 = sbr.rel (%p267) target = $region12
    $region11: #{bottleneck_forward.1} parent=5 // pred_region
      %s271 = ssub.s32 %s16, 1
      // Predicated region
      $region13: #{bottleneck_forward.1} parent=11 // pred_check
        %p272 = pneg %p63
      $region14: #{bottleneck_forward.1} parent=11 // pred_check_branch
        %274 = sbr.rel (%p272) target = $region16
      $region15: #{bottleneck_forward.1} parent=11 // pred_region
        _
      $region16: #{bottleneck_forward.1} parent=11 // pred_fallthru
        _
      // Predicated region
      $region17: #{bottleneck_forward.1} parent=11 // pred_check
        %p275 = pneg %p84
      $region18: #{bottleneck_forward.1} parent=11 // pred_check_branch
        %277 = sbr.rel (%p275) target = $region20
      $region19: #{bottleneck_forward.1} parent=11 // pred_region
        _
      $region20: #{bottleneck_forward.1} parent=11 // pred_fallthru
        _
      // Predicated region
      $region21: #{bottleneck_forward.1} parent=11 // pred_check
        %p278 = pneg %p105
      $region22: #{bottleneck_forward.1} parent=11 // pred_check_branch
        %280 = sbr.rel (%p278) target = $region24
      $region23: #{bottleneck_forward.1} parent=11 // pred_region
        _
      $region24: #{bottleneck_forward.1} parent=11 // pred_fallthru
        _
      // Predicated region
      $region25: #{bottleneck_forward.1} parent=11 // pred_check
        %p281 = pneg %p126
      $region26: #{bottleneck_forward.1} parent=11 // pred_check_branch
        %283 = sbr.rel (%p281) target = $region28
      $region27: #{bottleneck_forward.1} parent=11 // pred_region
        _
      $region28: #{bottleneck_forward.1} parent=11 // pred_fallthru
        _
      // Predicated region
      $region29: #{bottleneck_forward.1} parent=11 // pred_check
        %p284 = pneg %p147
      $region30: #{bottleneck_forward.1} parent=11 // pred_check_branch
        %286 = sbr.rel (%p284) target = $region32
      $region31: #{bottleneck_forward.1} parent=11 // pred_region
        _
      $region32: #{bottleneck_forward.1} parent=11 // pred_fallthru
        _
      // Predicated region
      $region33: #{bottleneck_forward.1} parent=11 // pred_check
        %p287 = pneg %p168
      $region34: #{bottleneck_forward.1} parent=11 // pred_check_branch
        %289 = sbr.rel (%p287) target = $region36
      $region35: #{bottleneck_forward.1} parent=11 // pred_region
        _
      $region36: #{bottleneck_forward.1} parent=11 // pred_fallthru
        _
      // Predicated region
      $region37: #{bottleneck_forward.1} parent=11 // pred_check
        %p290 = pneg %p189
      $region38: #{bottleneck_forward.1} parent=11 // pred_check_branch
        %292 = sbr.rel (%p290) target = $region40
      $region39: #{bottleneck_forward.1} parent=11 // pred_region
        _
      $region40: #{bottleneck_forward.1} parent=11 // pred_fallthru
        _
      // Predicated region
      $region41: #{bottleneck_forward.1} parent=11 // pred_check
        %p293 = pneg %p210
      $region42: #{bottleneck_forward.1} parent=11 // pred_check_branch
        %295 = sbr.rel (%p293) target = $region44
      $region43: #{bottleneck_forward.1} parent=11 // pred_region
        _
      $region44: #{bottleneck_forward.1} parent=11 // pred_fallthru
        _
      // Predicated region
      $region45: #{bottleneck_forward.1} parent=11 // pred_check
        %p296 = pneg %p231
      $region46: #{bottleneck_forward.1} parent=11 // pred_check_branch
        %298 = sbr.rel (%p296) target = $region48
      $region47: #{bottleneck_forward.1} parent=11 // pred_region
        _
      $region48: #{bottleneck_forward.1} parent=11 // pred_fallthru
        _
    $region12: #{bottleneck_forward.1} parent=5 // pred_fallthru
      _
    %p299 = scmp.lt.s32.totalorder %s16, 2
    // Predicated region
    $region49: #{bottleneck_forward.1} parent=5 // pred_check
      %p300 = pneg %p299
    $region50: #{bottleneck_forward.1} parent=5 // pred_check_branch
      %302 = sbr.rel (%p300) target = $region52
    $region51: #{bottleneck_forward.1} parent=5 // pred_region
      // Predicated region
      $region53: #{bottleneck_forward.1} parent=51 // pred_check
        %p303 = pneg %p36
      $region54: #{bottleneck_forward.1} parent=51 // pred_check_branch
        %305 = sbr.rel (%p303) target = $region56
      $region55: #{bottleneck_forward.1} parent=51 // pred_region
        %s306 = smul.u32 2, %s16
        %p307 = scmp.lt.s32.totalorder %s306, 3
        %s308 = scalar_select %p307, %s306, 3
        %s309 = smul.addr %s308, 2
        %s310 = smul.addr %s309, 8
        %s311 = scalar_lea.vmem %s0, %s310
        %s312 = smul.u32 2, %s16
      $region56: #{bottleneck_forward.1} parent=51 // pred_fallthru
        _
    $region52: #{bottleneck_forward.1} parent=5 // pred_fallthru
      _
    %p313 = scmp.le.s32.totalorder 1, %s16
    %p314 = scmp.lt.s32.totalorder %s16, 3
    %p315 = pnand %p313, %p314
    %p316 = pneg %p315
    // Predicated region
    $region57: #{bottleneck_forward.1} parent=5 // pred_check
      _
    $region58: #{bottleneck_forward.1} parent=5 // pred_check_branch
      %318 = sbr.rel (%p315) target = $region60
    $region59: #{bottleneck_forward.1} parent=5 // pred_region
      %s319 = ssub.s32 %s16, 1
      %s320 = smul.u32 2, %s21
      %p321 = scmp.lt.s32.totalorder %s320, 3
      %s322 = scalar_select %p321, %s320, 3
      %s323 = smul.addr %s322, 2
      %s324 = smul.addr %s323, 8
      %s325 = scalar_lea.vmem %s0, %s324
      %p326 = pneg %p42
      %p327 = pneg %p39
      %p328 = pneg %p63
      %p329 = pneg %p60
      %p330 = pneg %p84
      %p331 = pneg %p81
      %p332 = pneg %p105
      %p333 = pneg %p102
      %p334 = pneg %p126
      %p335 = pneg %p123
      %p336 = pneg %p147
      %p337 = pneg %p144
      %p338 = pneg %p168
      %p339 = pneg %p165
      %p340 = pneg %p189
      %p341 = pneg %p186
      %p342 = pneg %p210
      %p343 = pneg %p207
      %p344 = pneg %p231
      %p345 = pneg %p228
      %p346 = pneg %p257
      %p347 = pneg %p254
      %s348 = smul.u32 2, %s21
      %p349 = scmp.lt.s32.totalorder %s348, 3
      %s350 = scalar_select %p349, %s348, 3
      %s351 = smul.addr %s350, 2
      %s352 = smul.addr %s351, 8
      %s353 = scalar_lea.vmem %s10, %s352
      %s354 = smul.u32 2, %s21
      %p355 = scmp.lt.s32.totalorder %s354, 3
      %s356 = scalar_select %p355, %s354, 3
      %s357 = smul.addr %s356, 2
      %s358 = smul.addr %s357, 8
      %s359 = scalar_lea.vmem %s0, %s358
      %s360 = smul.u32 2, %s21
      %s361 = smul.u32 2, %s21
      %p362 = scmp.lt.s32.totalorder %s361, 3
      %s363 = scalar_select %p362, %s361, 3
      %s364 = smul.addr %s363, 2
      %s365 = smul.addr %s364, 8
      %s366 = scalar_lea.vmem %s10, %s365
      %s367 = smul.u32 2, %s21
      %v369 = vld [vmem:[%s359] sm:$0xff]
      %v370 = vld [vmem:[%s359 + $0x8] sm:$0xff]
      %v371 = vld [vmem:[%s359 + $0x10] sm:$0xff]
      %v372 = vld [vmem:[%s359 + $0x18] sm:$0xff]
      %v373 = vpack.c.bf16 %v371, %v369
      %v374 = vpack.c.bf16 %v372, %v370
      %v375 = vld [vmem:[%s1] sm:$0xf]
      %v376 = vld [vmem:[%s1 + $0x4] sm:$0xf]
      %v377 = vld [vmem:[%s1 + $0x8] sm:$0xf]
      %v378 = vld [vmem:[%s1 + $0xc] sm:$0xf]
      %v379 = vld [vmem:[%s1 + $0x10] sm:$0xf]
      %v380 = vld [vmem:[%s1 + $0x14] sm:$0xf]
      %v381 = vld [vmem:[%s1 + $0x18] sm:$0xf]
      %v382 = vld [vmem:[%s1 + $0x1c] sm:$0xf]
      %v383 = vld [vmem:[%s1 + $0x20] sm:$0xf]
      %v384 = vld [vmem:[%s1 + $0x24] sm:$0xf]
      %v385 = vld [vmem:[%s1 + $0x28] sm:$0xf]
      %v386 = vld [vmem:[%s1 + $0x2c] sm:$0xf]
      %v387 = vld [vmem:[%s1 + $0x30] sm:$0xf]
      %v388 = vld [vmem:[%s1 + $0x34] sm:$0xf]
      %v389 = vld [vmem:[%s1 + $0x38] sm:$0xf]
      %v390 = vld [vmem:[%s1 + $0x3c] sm:$0xf]
      %v391 = vld [vmem:[%s1 + $0x40] sm:$0xf]
      %v392 = vld [vmem:[%s1 + $0x44] sm:$0xf]
      %v393 = vld [vmem:[%s1 + $0x48] sm:$0xf]
      %v394 = vld [vmem:[%s1 + $0x4c] sm:$0xf]
      %v395 = vld [vmem:[%s1 + $0x50] sm:$0xf]
      %v396 = vld [vmem:[%s1 + $0x54] sm:$0xf]
      %v397 = vld [vmem:[%s1 + $0x58] sm:$0xf]
      %v398 = vld [vmem:[%s1 + $0x5c] sm:$0xf]
      %v399 = vld [vmem:[%s1 + $0x60] sm:$0xf]
      %v400 = vld [vmem:[%s1 + $0x64] sm:$0xf]
      %v401 = vld [vmem:[%s1 + $0x68] sm:$0xf]
      %v402 = vld [vmem:[%s1 + $0x6c] sm:$0xf]
      %v403 = vld [vmem:[%s1 + $0x70] sm:$0xf]
      %v404 = vld [vmem:[%s1 + $0x74] sm:$0xf]
      %v405 = vld [vmem:[%s1 + $0x78] sm:$0xf]
      %v406 = vld [vmem:[%s1 + $0x7c] sm:$0xf]
      %v407 = vld [vmem:[%s4] sm:$0x1]
      %v409 = vlaneseq
      %v410 = vshrl.u32 %v409, 7
      %v411 = vsub.s32 0, %v410
      %v412 = vrot.slane %v407, %v411
      %v446 = vunpack.c.l.b16 %v375
      %v447 = vunpack.c.l.b16 %v376
      %v448 = vunpack.c.l.b16 %v377
      %v449 = vunpack.c.l.b16 %v378
      %v450 = vunpack.c.l.b16 %v379
      %v451 = vunpack.c.l.b16 %v380
      %v452 = vunpack.c.l.b16 %v381
      %v453 = vunpack.c.l.b16 %v382
      %v454 = vunpack.c.l.b16 %v383
      %v455 = vunpack.c.l.b16 %v384
      %v456 = vunpack.c.l.b16 %v385
      %v457 = vunpack.c.l.b16 %v386
      %v458 = vunpack.c.l.b16 %v387
      %v459 = vunpack.c.l.b16 %v388
      %v460 = vunpack.c.l.b16 %v389
      %v461 = vunpack.c.l.b16 %v390
      %v462 = vunpack.c.l.b16 %v391
      %v463 = vunpack.c.l.b16 %v392
      %v464 = vunpack.c.l.b16 %v393
      %v465 = vunpack.c.l.b16 %v394
      %v466 = vunpack.c.l.b16 %v395
      %v467 = vunpack.c.l.b16 %v396
      %v468 = vunpack.c.l.b16 %v397
      %v469 = vunpack.c.l.b16 %v398
      %v470 = vunpack.c.l.b16 %v399
      %v471 = vunpack.c.l.b16 %v400
      %v472 = vunpack.c.l.b16 %v401
      %v473 = vunpack.c.l.b16 %v402
      %v474 = vunpack.c.l.b16 %v403
      %v475 = vunpack.c.l.b16 %v404
      %v476 = vunpack.c.l.b16 %v405
      %v477 = vunpack.c.l.b16 %v406
      %v478 = vpack.c.b16 %v447, %v446
      %v479 = vpack.c.b16 %v449, %v448
      %v480 = vpack.c.b16 %v451, %v450
      %v481 = vpack.c.b16 %v453, %v452
      %v482 = vpack.c.b16 %v455, %v454
      %v483 = vpack.c.b16 %v457, %v456
      %v484 = vpack.c.b16 %v459, %v458
      %v485 = vpack.c.b16 %v461, %v460
      %v486 = vpack.c.b16 %v463, %v462
      %v487 = vpack.c.b16 %v465, %v464
      %v488 = vpack.c.b16 %v467, %v466
      %v489 = vpack.c.b16 %v469, %v468
      %v490 = vpack.c.b16 %v471, %v470
      %v491 = vpack.c.b16 %v473, %v472
      %v492 = vpack.c.b16 %v475, %v474
      %v493 = vpack.c.b16 %v477, %v476
      %510 = vmatprep.subr.bf16.mxu0 0
      %511 = vmatpush1.bf16.msra.mxu0 %v485
      %512 = vmatprep.subr.bf16.mxu0 0
      %513 = vmatpush1.bf16.msra.mxu0 %v484
      %514 = vmatprep.subr.bf16.mxu0 0
      %515 = vmatpush1.bf16.msra.mxu0 %v483
      %516 = vmatprep.subr.bf16.mxu0 0
      %517 = vmatpush1.bf16.msra.mxu0 %v482
      %518 = vmatprep.subr.bf16.mxu0 0
      %519 = vmatpush1.bf16.msra.mxu0 %v481
      %520 = vmatprep.subr.bf16.mxu0 0
      %521 = vmatpush1.bf16.msra.mxu0 %v480
      %522 = vmatprep.subr.bf16.mxu0 0
      %523 = vmatpush1.bf16.msra.mxu0 %v479
      %524 = vmatprep.subr.bf16.mxu0 0
      %525 = vmatpush1.bf16.msra.mxu0 %v478
      %526 = vmatprep.subr.bf16.mxu0 0
      %527 = vmatpush2.bf16.msra.mxu0 %v493
      %528 = vmatprep.subr.bf16.mxu0 0
      %529 = vmatpush2.bf16.msra.mxu0 %v492
      %530 = vmatprep.subr.bf16.mxu0 0
      %531 = vmatpush2.bf16.msra.mxu0 %v491
      %532 = vmatprep.subr.bf16.mxu0 0
      %533 = vmatpush2.bf16.msra.mxu0 %v490
      %534 = vmatprep.subr.bf16.mxu0 0
      %535 = vmatpush2.bf16.msra.mxu0 %v489
      %536 = vmatprep.subr.bf16.mxu0 0
      %537 = vmatpush2.bf16.msra.mxu0 %v488
      %538 = vmatprep.subr.bf16.mxu0 0
      %539 = vmatpush2.bf16.msra.mxu0 %v487
      %540 = vmatprep.subr.bf16.mxu0 0
      %541 = vmatpush2.bf16.msra.mxu0 %v486
      %542 = vmatprep.mubr.bf16.mxu0 %v374
      %543 = vmatmul.mubr.bf16.gmra.mxu0 %v373
      %v544 = vpop.f32.mrf.mxu0
      %v545 = vadd.f32 %v412, %v544
      %v546 = vpop.f32.mrf.mxu0
      %v547 = vpop.f32.mrf.mxu0
      %v548 = vadd.f32 %v412, %v547
      %v549 = vpop.f32.mrf.mxu0
      %550 = vdwg.mxu0
      %v551 = vld [vmem:[%s5] sm:$0x1]
      %v552 = vmax.f32 %v545, 0.0
      %v553 = vmax.f32 %v548, 0.0
      %v554 = vmin.f32 %v545, 0.0
      %v555 = vmin.f32 %v548, 0.0
      %v557 = vlaneseq
      %v558 = vshrl.u32 %v557, 7
      %v559 = vsub.s32 0, %v558
      %v560 = vrot.slane %v551, %v559
      %v562 = vmul.f32 %v560, %v554
      %v563 = vmul.f32 %v560, %v555
      %v564 = vadd.f32 %v552, %v562
      %v565 = vadd.f32 %v553, %v563
      %v566 = vlaneseq
      %v567 = vshrl.u32 %v566, 7
      %v568 = vadd.s32 %v567, 8
      %vm569 = vcmp.lt.s32.totalorder %v567, 0
      %v570 = vsub.s32 0, %v567
      %v571 = vsel %vm569, %v570, %v567
      %v572 = vshrl.u32 %v571, 4
      %v573 = vand.u32 %v571, 15
      %v574 = vsub.s32 0, %v573
      %v575 = vsel %vm569, %v574, %v573
      %vm576 = vcmp.lt.s32.totalorder %v568, 0
      %v577 = vsub.s32 0, %v568
      %v578 = vsel %vm576, %v577, %v568
      %v579 = vshrl.u32 %v578, 4
      %v580 = vand.u32 %v578, 15
      %v581 = vsub.s32 0, %v580
      %v582 = vsel %vm576, %v581, %v580
      %vm583 = vcmp.ne.s32.totalorder %v575, 0
      %vm584 = vcmp.ne.s32.totalorder %v582, 0
      %vm585 = vcmp.lt.s32.totalorder %v575, 0
      %vm586 = vcmp.lt.s32.totalorder %v582, 0
      %vm587 = vmand %vm585, %vm583
      %vm588 = vmand %vm586, %vm584
      %v589 = vadd.s32 %v575, 16
      %v590 = vadd.s32 %v582, 16
      %v591 = vsel %vm587, %v589, %v575
      %v592 = vsel %vm588, %v590, %v582
      %vm593 = vcmp.ge.s32.totalorder %v591, 1
      %vm594 = vcmp.ge.s32.totalorder %v592, 1
      %v595 = vrot.slane %v564, 7
      %v596 = vrot.slane %v565, 7
      %vm597 = vcmp.lt.s32.totalorder %v567, 1
      %v598 = vsel %vm597, %v595, %v596
      %v599 = vsel %vm597, %v596, %v595
      %v600 = vsel %vm593, 1, 0
      %v601 = vsel %vm594, 1, 0
      %vm602 = vcmp.eq.s32.totalorder %v600, 1
      %vm603 = vcmp.eq.s32.totalorder %v601, 1
      %v604 = vsel %vm602, %v599, 0.0
      %v605 = vsel %vm603, %v598, 0.0
      %vm606 = vcmp.le.s32.totalorder %v591, 14
      %vm607 = vcmp.le.s32.totalorder %v592, 14
      %v608 = vrot.slane %v564, 1
      %v609 = vrot.slane %v565, 1
      %vm610 = vcmp.lt.s32.totalorder %v567, 7
      %v611 = vsel %vm610, %v608, %v609
      %v612 = vsel %vm610, %v609, %v608
      %v613 = vsel %vm606, 1, 0
      %v614 = vsel %vm607, 1, 0
      %vm615 = vcmp.eq.s32.totalorder %v613, 1
      %vm616 = vcmp.eq.s32.totalorder %v614, 1
      %v617 = vsel %vm615, %v611, 0.0
      %v618 = vsel %vm616, %v612, 0.0
      %621 = vrot.lane.b32.xlu0 %v564, 64
      %v622 = vpop.permute.xlu0 %621
      %623 = vrot.lane.b32.xlu0 %v565, 64
      %v624 = vpop.permute.xlu0 %623
      %vm627 = vcmask 523264
      %v628 = vsel %vm627, %v604, %v622
      %v629 = vsel %vm627, %v605, %v624
      %v630 = vpack.c.bf16 %v629, %v628
      %v631 = vpack.c.bf16 %v618, %v617
      %v632 = vld [vmem:[%s2] sm:$0xf]
      %v633 = vld [vmem:[%s2 + $0x4] sm:$0xf]
      %v634 = vld [vmem:[%s2 + $0x8] sm:$0xf]
      %v635 = vld [vmem:[%s2 + $0xc] sm:$0xf]
      %v636 = vld [vmem:[%s2 + $0x10] sm:$0xf]
      %v637 = vld [vmem:[%s2 + $0x14] sm:$0xf]
      %v638 = vld [vmem:[%s2 + $0x18] sm:$0xf]
      %v639 = vld [vmem:[%s2 + $0x1c] sm:$0xf]
      %v640 = vld [vmem:[%s2 + $0x20] sm:$0xf]
      %v641 = vld [vmem:[%s2 + $0x24] sm:$0xf]
      %v642 = vld [vmem:[%s2 + $0x28] sm:$0xf]
      %v643 = vld [vmem:[%s2 + $0x2c] sm:$0xf]
      %v644 = vld [vmem:[%s2 + $0x30] sm:$0xf]
      %v645 = vld [vmem:[%s2 + $0x34] sm:$0xf]
      %v646 = vld [vmem:[%s2 + $0x38] sm:$0xf]
      %v647 = vld [vmem:[%s2 + $0x3c] sm:$0xf]
      %v648 = vld [vmem:[%s2 + $0x40] sm:$0xf]
      %v649 = vld [vmem:[%s2 + $0x44] sm:$0xf]
      %v650 = vld [vmem:[%s2 + $0x48] sm:$0xf]
      %v651 = vld [vmem:[%s2 + $0x4c] sm:$0xf]
      %v652 = vld [vmem:[%s2 + $0x50] sm:$0xf]
      %v653 = vld [vmem:[%s2 + $0x54] sm:$0xf]
      %v654 = vld [vmem:[%s2 + $0x58] sm:$0xf]
      %v655 = vld [vmem:[%s2 + $0x5c] sm:$0xf]
      %v656 = vld [vmem:[%s6] sm:$0x1]
      %v658 = vlaneseq
      %v659 = vshrl.u32 %v658, 7
      %v660 = vsub.s32 0, %v659
      %v661 = vrot.slane %v656, %v660
      %v687 = vunpack.c.l.b16 %v632
      %v688 = vunpack.c.l.b16 %v633
      %v689 = vunpack.c.l.b16 %v634
      %v690 = vunpack.c.l.b16 %v635
      %v691 = vunpack.c.l.b16 %v636
      %v692 = vunpack.c.l.b16 %v637
      %v693 = vunpack.c.l.b16 %v638
      %v694 = vunpack.c.l.b16 %v639
      %v695 = vunpack.c.l.b16 %v640
      %v696 = vunpack.c.l.b16 %v641
      %v697 = vunpack.c.l.b16 %v642
      %v698 = vunpack.c.l.b16 %v643
      %v699 = vunpack.c.l.b16 %v644
      %v700 = vunpack.c.l.b16 %v645
      %v701 = vunpack.c.l.b16 %v646
      %v702 = vunpack.c.l.b16 %v647
      %v703 = vunpack.c.l.b16 %v648
      %v704 = vunpack.c.l.b16 %v649
      %v705 = vunpack.c.l.b16 %v650
      %v706 = vunpack.c.l.b16 %v651
      %v707 = vunpack.c.l.b16 %v652
      %v708 = vunpack.c.l.b16 %v653
      %v709 = vunpack.c.l.b16 %v654
      %v710 = vunpack.c.l.b16 %v655
      %v711 = vpack.c.b16 %v688, %v687
      %v712 = vpack.c.b16 %v690, %v689
      %v713 = vpack.c.b16 %v692, %v691
      %v714 = vpack.c.b16 %v694, %v693
      %v715 = vpack.c.b16 %v696, %v695
      %v716 = vpack.c.b16 %v698, %v697
      %v717 = vpack.c.b16 %v700, %v699
      %v718 = vpack.c.b16 %v702, %v701
      %v719 = vpack.c.b16 %v704, %v703
      %v720 = vpack.c.b16 %v706, %v705
      %v721 = vpack.c.b16 %v708, %v707
      %v722 = vpack.c.b16 %v710, %v709
      %v736 = vsel %vm627, %v631, 0
      %738 = vmatprep.subr.bf16.mxu0 0
      %739 = vmatpush1.bf16.msra.mxu0 %v718
      %740 = vmatprep.subr.bf16.mxu0 0
      %741 = vmatpush1.bf16.msra.mxu0 %v717
      %742 = vmatprep.subr.bf16.mxu0 0
      %743 = vmatpush1.bf16.msra.mxu0 %v716
      %744 = vmatprep.subr.bf16.mxu0 0
      %745 = vmatpush1.bf16.msra.mxu0 %v715
      %746 = vmatprep.subr.bf16.mxu0 0
      %747 = vmatpush1.bf16.msra.mxu0 %v714
      %748 = vmatprep.subr.bf16.mxu0 0
      %749 = vmatpush1.bf16.msra.mxu0 %v713
      %750 = vmatprep.subr.bf16.mxu0 0
      %751 = vmatpush1.bf16.msra.mxu0 %v712
      %752 = vmatprep.subr.bf16.mxu0 0
      %753 = vmatpush1.bf16.msra.mxu0 %v711
      %754 = vmatprep.subr.bf16.mxu0 0
      %755 = vmatpush2.bf16.msra.mxu0 0
      %756 = vmatprep.subr.bf16.mxu0 0
      %757 = vmatpush2.bf16.msra.mxu0 0
      %758 = vmatprep.subr.bf16.mxu0 0
      %759 = vmatpush2.bf16.msra.mxu0 0
      %760 = vmatprep.subr.bf16.mxu0 0
      %761 = vmatpush2.bf16.msra.mxu0 0
      %762 = vmatprep.subr.bf16.mxu0 0
      %763 = vmatpush2.bf16.msra.mxu0 %v722
      %764 = vmatprep.subr.bf16.mxu0 0
      %765 = vmatpush2.bf16.msra.mxu0 %v721
      %766 = vmatprep.subr.bf16.mxu0 0
      %767 = vmatpush2.bf16.msra.mxu0 %v720
      %768 = vmatprep.subr.bf16.mxu0 0
      %769 = vmatpush2.bf16.msra.mxu0 %v719
      %770 = vmatprep.mubr.bf16.mxu0 %v736
      %771 = vmatmul.mubr.bf16.gmra.mxu0 %v630
      %v772 = vpop.f32.mrf.mxu0
      %v773 = vadd.f32 %v661, %v772
      %v774 = vpop.f32.mrf.mxu0
      %v775 = vpop.f32.mrf.mxu0
      %v776 = vadd.f32 %v661, %v775
      %v777 = vpop.f32.mrf.mxu0
      %778 = vdwg.mxu0
      %v779 = vld [vmem:[%s7] sm:$0x1]
      %v780 = vmax.f32 %v773, 0.0
      %v781 = vmax.f32 %v776, 0.0
      %v782 = vmin.f32 %v773, 0.0
      %v783 = vmin.f32 %v776, 0.0
      %v785 = vlaneseq
      %v786 = vshrl.u32 %v785, 7
      %v787 = vsub.s32 0, %v786
      %v788 = vrot.slane %v779, %v787
      %v790 = vmul.f32 %v788, %v782
      %v791 = vmul.f32 %v788, %v783
      %v792 = vadd.f32 %v780, %v790
      %v793 = vadd.f32 %v781, %v791
      %v794 = vpack.c.bf16 %v793, %v792
      %v795 = vld [vmem:[%s3] sm:$0xff]
      %v796 = vld [vmem:[%s3 + $0x8] sm:$0xff]
      %v797 = vld [vmem:[%s3 + $0x10] sm:$0xff]
      %v798 = vld [vmem:[%s3 + $0x18] sm:$0xff]
      %v799 = vld [vmem:[%s3 + $0x20] sm:$0xff]
      %v800 = vld [vmem:[%s3 + $0x28] sm:$0xff]
      %v801 = vld [vmem:[%s3 + $0x30] sm:$0xff]
      %v802 = vld [vmem:[%s3 + $0x38] sm:$0xff]
      %v803 = vld [vmem:[%s8] sm:$0x3]
      %v805 = vlaneseq
      %v806 = vshrl.u32 %v805, 7
      %v807 = vsub.s32 0, %v806
      %v808 = vrot.slane %v803, %v807
      %v809 = vlaneseq
      %v810 = vshrl.u32 %v809, 7
      %v811 = vsub.s32 1, %v810
      %v812 = vrot.slane %v803, %v811
      %v823 = vunpack.c.l.b16 %v795
      %v824 = vunpack.c.h.b16 %v795
      %v825 = vunpack.c.l.b16 %v796
      %v826 = vunpack.c.h.b16 %v796
      %v827 = vunpack.c.l.b16 %v797
      %v828 = vunpack.c.h.b16 %v797
      %v829 = vunpack.c.l.b16 %v798
      %v830 = vunpack.c.h.b16 %v798
      %v831 = vunpack.c.l.b16 %v799
      %v832 = vunpack.c.h.b16 %v799
      %v833 = vunpack.c.l.b16 %v800
      %v834 = vunpack.c.h.b16 %v800
      %v835 = vunpack.c.l.b16 %v801
      %v836 = vunpack.c.h.b16 %v801
      %v837 = vunpack.c.l.b16 %v802
      %v838 = vunpack.c.h.b16 %v802
      %v839 = vpack.c.b16 %v825, %v823
      %v840 = vpack.c.b16 %v826, %v824
      %v841 = vpack.c.b16 %v829, %v827
      %v842 = vpack.c.b16 %v830, %v828
      %v843 = vpack.c.b16 %v833, %v831
      %v844 = vpack.c.b16 %v834, %v832
      %v845 = vpack.c.b16 %v837, %v835
      %v846 = vpack.c.b16 %v838, %v836
      %v856 = vsel %vm627, %v794, 0
      %858 = vmatprep.subr.bf16.mxu0 0
      %859 = vmatpush1.bf16.msra.mxu0 0
      %860 = vmatprep.subr.bf16.mxu0 0
      %861 = vmatpush1.bf16.msra.mxu0 0
      %862 = vmatprep.subr.bf16.mxu0 0
      %863 = vmatpush1.bf16.msra.mxu0 0
      %864 = vmatprep.subr.bf16.mxu0 0
      %865 = vmatpush1.bf16.msra.mxu0 0
      %866 = vmatprep.subr.bf16.mxu0 %v846
      %867 = vmatpush1.bf16.msra.mxu0 %v845
      %868 = vmatprep.subr.bf16.mxu0 %v844
      %869 = vmatpush1.bf16.msra.mxu0 %v843
      %870 = vmatprep.subr.bf16.mxu0 %v842
      %871 = vmatpush1.bf16.msra.mxu0 %v841
      %872 = vmatprep.subr.bf16.mxu0 %v840
      %873 = vmatpush1.bf16.msra.mxu0 %v839
      %874 = vmatprep.subr.bf16.mxu0 0
      %875 = vmatpush2.bf16.msra.mxu0 0
      %876 = vmatprep.subr.bf16.mxu0 0
      %877 = vmatpush2.bf16.msra.mxu0 0
      %878 = vmatprep.subr.bf16.mxu0 0
      %879 = vmatpush2.bf16.msra.mxu0 0
      %880 = vmatprep.subr.bf16.mxu0 0
      %881 = vmatpush2.bf16.msra.mxu0 0
      %882 = vmatprep.subr.bf16.mxu0 0
      %883 = vmatpush2.bf16.msra.mxu0 0
      %884 = vmatprep.subr.bf16.mxu0 0
      %885 = vmatpush2.bf16.msra.mxu0 0
      %886 = vmatprep.subr.bf16.mxu0 0
      %887 = vmatpush2.bf16.msra.mxu0 0
      %888 = vmatprep.subr.bf16.mxu0 0
      %889 = vmatpush2.bf16.msra.mxu0 0
      %890 = vmatprep.mubr.bf16.mxu0 0
      %891 = vmatmul.mubr.bf16.gmra.mxu0 %v856
      %v892 = vpop.f32.mrf.mxu0
      %v893 = vadd.f32 %v808, %v892
      %v894 = vpop.f32.mrf.mxu0
      %v895 = vadd.f32 %v812, %v894
      %v896 = vpop.f32.mrf.mxu0
      %v897 = vadd.f32 %v808, %v896
      %v898 = vpop.f32.mrf.mxu0
      %v899 = vadd.f32 %v812, %v898
      %900 = vdwg.mxu0
      %v901 = vld [vmem:[%s9] sm:$0x3]
      %v902 = vmax.f32 %v893, 0.0
      %v903 = vmax.f32 %v895, 0.0
      %v904 = vmax.f32 %v897, 0.0
      %v905 = vmax.f32 %v899, 0.0
      %v906 = vmin.f32 %v893, 0.0
      %v907 = vmin.f32 %v895, 0.0
      %v908 = vmin.f32 %v897, 0.0
      %v909 = vmin.f32 %v899, 0.0
      %v911 = vlaneseq
      %v912 = vshrl.u32 %v911, 7
      %v913 = vsub.s32 0, %v912
      %v914 = vrot.slane %v901, %v913
      %v915 = vlaneseq
      %v916 = vshrl.u32 %v915, 7
      %v917 = vsub.s32 1, %v916
      %v918 = vrot.slane %v901, %v917
      %v921 = vmul.f32 %v914, %v906
      %v922 = vmul.f32 %v918, %v907
      %v923 = vmul.f32 %v914, %v908
      %v924 = vmul.f32 %v918, %v909
      %v925 = vadd.f32 %v902, %v921
      %v926 = vadd.f32 %v903, %v922
      %v927 = vadd.f32 %v904, %v923
      %v928 = vadd.f32 %v905, %v924
      %v929 = vadd.f32 %v369, %v925
      %v930 = vadd.f32 %v370, %v926
      %v931 = vadd.f32 %v371, %v927
      %v932 = vadd.f32 %v372, %v928
      %v933 = vmax.f32 %v929, 0.0
      %v934 = vmax.f32 %v930, 0.0
      %v935 = vmax.f32 %v931, 0.0
      %v936 = vmax.f32 %v932, 0.0
      %937 = vst [vmem:[%s366] sm:$0xff] %v933
      %938 = vst [vmem:[%s366 + $0x8] sm:$0xff] %v934
      %939 = vst [vmem:[%s366 + $0x10] sm:$0xff] %v935
      %940 = vst [vmem:[%s366 + $0x18] sm:$0xff] %v936
      %s941 = smul.u32 2, %s21
      %p942 = scmp.lt.s32.totalorder %s941, 3
      %s943 = scalar_select %p942, %s941, 3
      %s944 = smul.addr %s943, 2
      %s945 = smul.addr %s944, 8
      %s946 = scalar_lea.vmem %s10, %s945
      // Predicated region
      $region61: #{bottleneck_forward.1} parent=59 // pred_check
        %p947 = pneg %p254
      $region62: #{bottleneck_forward.1} parent=59 // pred_check_branch
        %949 = sbr.rel (%p947) target = $region64
      $region63: #{bottleneck_forward.1} parent=59 // pred_region
        %s950 = smul.u32 2, %s21
      $region64: #{bottleneck_forward.1} parent=59 // pred_fallthru
        _
    $region60: #{bottleneck_forward.1} parent=5 // pred_fallthru
      _
    %p951 = scmp.le.s32.totalorder 2, %s16
    // Predicated region
    $region65: #{bottleneck_forward.1} parent=5 // pred_check
      %p952 = pneg %p951
    $region66: #{bottleneck_forward.1} parent=5 // pred_check_branch
      %954 = sbr.rel (%p952) target = $region68
    $region67: #{bottleneck_forward.1} parent=5 // pred_region
      %s955 = ssub.s32 %s16, 2
      // Predicated region
      $region69: #{bottleneck_forward.1} parent=67 // pred_check
        %p956 = pneg %p260
      $region70: #{bottleneck_forward.1} parent=67 // pred_check_branch
        %958 = sbr.rel (%p956) target = $region72
      $region71: #{bottleneck_forward.1} parent=67 // pred_region
        %s959 = smul.u32 2, %s22
        %p960 = scmp.lt.s32.totalorder %s959, 3
        %s961 = scalar_select %p960, %s959, 3
        %s962 = smul.addr %s961, 2
        %s963 = smul.addr %s962, 8
        %s964 = scalar_lea.vmem %s10, %s963
      $region72: #{bottleneck_forward.1} parent=67 // pred_fallthru
        _
    $region68: #{bottleneck_forward.1} parent=5 // pred_fallthru
      _
  $region6: #{bottleneck_forward.1} parent=0 // loop_footer
    %s20 = sadd.s32 1, %s16
  $region7: #{bottleneck_forward.1} parent=0 // loop_footer_branch
    %15 = sbr.rel target = $region3
  $region8: #{bottleneck_forward.1} parent=0 // loop_exit
    _

</llo_original>
